<compile_context>
chip_gen: v5e
topology: v5e:2x2
jax: 0.10.0
libtpu: 0.0.40
codegen_flags: <defaults>
</compile_context>

<pallas_src>
import jax
import jax.numpy as jnp
from jax.experimental import pallas as pl
from jax.experimental.pallas import tpu as pltpu


def _round_up(x, m):
    return -(-x // m) * m


# ----------------------------- Pallas kernel ------------------------------- #
def _projector_scale_kernel(x_ref, w_ref, s_ref, o_ref):
    # x_ref: (B, S)    bf16 sb_input, resident across the whole grid (tiny)
    # w_ref: (S, tn)   bf16 projector-weight column tile (the only big stream)
    # s_ref: (1, tn)   f32 per-output-column scale = mask * gathered spectra
    # o_ref: (B, tn)   f32 output tile (lane-dense; partial last tile is masked)
    acc = jnp.dot(x_ref[...], w_ref[...], preferred_element_type=jnp.float32)
    o_ref[...] = (acc * s_ref[...]).astype(o_ref.dtype)
    # TODO(synk): if downstream tolerates bf16, make o_ref bf16 to halve the
    #             output writeback (keep f32 accumulation + f32 scale).


# ------------------------------- tiling ------------------------------------ #
def _vmem_capacity_bytes(default=64 << 20):
    # v7x: 64 MiB VMEM per TensorCore; v5e/v6e: 128 MiB.  Fall back to the
    # smallest (v7x) so the chosen tile always fits.
    try:
        return int(pltpu.get_tpu_info().vmem_capacity_bytes)
    except Exception:
        return default


def _tiling(S, N, batch, w_bytes=2, out_bytes=4, max_tn=32768):
    """Pick (tn, n_pad, steps, vmem_estimate) for the column-streamed matmul.

    tn is sized against the chip's real VMEM with headroom (double-buffered
    weight + output + scale tiles, resident bf16 input).  Big tiles amortize
    the ~0.35 us/step overhead; the grid is only forced even when it already
    has >= 4 steps (balances v7x's two TensorCores without hurting v5e/v6e)."""
    vmem = _vmem_capacity_bytes()
    budget = min(max(vmem // 2 - (8 << 20), 8 << 20), 40 << 20)
    per_col = 2 * S * w_bytes + 2 * batch * out_bytes + 2 * 4
    fixed = 2 * batch * S * w_bytes
    tn_cap = max(128, min(max_tn, ((budget - fixed) // per_col) // 128 * 128))
    steps = pl.cdiv(N, tn_cap)
    if steps >= 4 and steps % 2:
        steps += 1                      # even grid length only when it is cheap
    tn = _round_up(pl.cdiv(N, steps), 128)
    n_pad = steps * tn
    vmem_est = fixed + per_col * tn
    return tn, n_pad, steps, vmem_est


# ------------------------------- glue (JAX) -------------------------------- #
def make_grid3d(max_r):
    """Half-Fourier 3D grid coords, within-radius mask and spectral index."""
    ax_full = jnp.arange(-max_r, max_r + 1, dtype=jnp.float32)   # L
    ax_half = jnp.arange(0, max_r + 1, dtype=jnp.float32)        # L//2 + 1
    z, y, x = jnp.meshgrid(ax_full, ax_full, ax_half, indexing="ij")
    coord = jnp.stack([z, y, x], axis=-1)                        # [L, L, L//2+1, 3]
    radius = jnp.sqrt(jnp.sum(jnp.square(coord), -1))
    spectral_idx = jnp.round(radius).astype(jnp.int32)
    mask = spectral_idx <= max_r
    return coord, mask, spectral_idx


def prepare_projector_weight(weight, n_pad, dtype=jnp.bfloat16):
    """Flatten [S, n_grid, 2] -> padded [S, n_pad] ONCE, outside the hot path.

    bf16 halves weight HBM traffic (the kernel accumulates in f32)."""
    S, n_grid, _ = weight.shape
    N = 2 * n_grid
    w_flat = weight.reshape(S, N).astype(dtype)
    return jnp.zeros((S, n_pad), dtype).at[:, :N].set(w_flat)


def prepare_column_scale(spectral_factor, data_spectra, grid3d_size, n_pad):
    """Per-output-column scale = mask * spectra_to_grid(spectral_factor*data_spectra).

    Prepared ONCE (eval/serving): hoists make_grid3d / gather / repeat / pad out
    of the jitted forward.  Padded columns carry scale 0 by construction."""
    max_r = grid3d_size // 2
    _, mask, spectral_idx = make_grid3d(max_r)
    mask_f = mask.reshape(-1)
    sidx_c = jnp.clip(spectral_idx.reshape(-1), 0, max_r)
    mod = spectral_factor if data_spectra is None else spectral_factor * data_spectra
    spec_grid = jnp.where(mask_f, mod[sidx_c], 0.0)              # [n_grid]
    scale = jnp.repeat(spec_grid, 2)                             # real/imag share factor
    return jnp.zeros((1, n_pad), jnp.float32).at[0, : scale.shape[0]].set(scale)


def structure_decoder_forward(sb_input, w_padded, s_padded, *, grid3d_size, tn,
                              vmem_limit_bytes=None):
    """Pallas StructureDecoder.forward (3D path, no postprocess, eval mode)."""
    max_r = grid3d_size // 2
    L = 2 * max_r + 1
    n_grid = L * L * (L // 2 + 1)
    N = 2 * n_grid
    B, S = sb_input.shape
    S_w, n_pad = w_padded.shape
    assert S_w == S and n_pad % tn == 0 and n_pad >= N
    assert s_padded.shape == (1, n_pad)
    steps = n_pad // tn

    x = sb_input.astype(jnp.bfloat16)

    cost = pl.CostEstimate(
        flops=2 * B * S * n_pad,
        transcendentals=0,
        bytes_accessed=S * n_pad * 2 + B * N * 4 + B * S * 2 + n_pad * 4,
    )

    out = pl.pallas_call(
        _projector_scale_kernel,
        out_shape=jax.ShapeDtypeStruct((B, N), jnp.float32),
        grid_spec=pltpu.PrefetchScalarGridSpec(
            num_scalar_prefetch=0,
            grid=(steps,),
            in_specs=[
                pl.BlockSpec((B, S), lambda j: (0, 0)),    # resident input (tiny)
                pl.BlockSpec((S, tn), lambda j: (0, j)),   # weight stream (bf16)
                pl.BlockSpec((1, tn), lambda j: (0, j)),   # per-column scale (f32)
            ],
            # Output is exactly (B, N): no pad rows, and the partially
            # out-of-bounds final column tile is masked by Pallas -> no epilogue
            # slice/copy is needed.
            out_specs=pl.BlockSpec((B, tn), lambda j: (0, j)),
        ),
        compiler_params=pltpu.CompilerParams(
            dimension_semantics=("parallel",),
            vmem_limit_bytes=vmem_limit_bytes),
        cost_estimate=cost,
    )(x, w_padded, s_padded)

    # Same as x_ft_.view(-1, image_size, image_size, image_size//2+1, 2);
    # pure metadata reshape (no HBM copy).
    return out.reshape(B, L, L, L // 2 + 1, 2)


def _reference_forward(sb_input, weight, spectral_factor, grid3d_size,
                       data_spectra=None, quantize_bf16=False):
    """Pure-JAX reference mirroring the PyTorch forward (3D, no postprocess)."""
    max_r = grid3d_size // 2
    L = 2 * max_r + 1
    _, mask, spectral_idx = make_grid3d(max_r)
    mask_f = mask.reshape(-1)
    sidx_c = jnp.clip(spectral_idx.reshape(-1), 0, max_r)

    sb, w = sb_input, weight
    if quantize_bf16:                      # same operand quantization as kernel
        sb = sb.astype(jnp.bfloat16).astype(jnp.float32)
        w = w.astype(jnp.bfloat16).astype(jnp.float32)
    x_full = jnp.einsum("bs,snc->bnc", sb, w,
                        preferred_element_type=jnp.float32)          # [B, n_grid, 2]
    mod = spectral_factor if data_spectra is None else spectral_factor * data_spectra
    spec = jnp.where(mask_f, mod[sidx_c], 0.0)
    x_full = x_full * spec[None, :, None]                            # unmasked -> 0
    return x_full.reshape(-1, L, L, L // 2 + 1, 2)


# --------------------------------- main ------------------------------------ #
if __name__ == "__main__":
    grid3d_size = 16          # -> max_r = 8, image_size L = 17
    sb_input_size = 32
    batch = 2

    max_r = grid3d_size // 2
    L = 2 * max_r + 1
    n_grid = L * L * (L // 2 + 1)
    N = 2 * n_grid

    key = jax.random.PRNGKey(0)
    k_sb, k_w, k_ds = jax.random.split(key, 3)

    sb_input = jax.random.normal(k_sb, (batch, sb_input_size), jnp.float32)
    # Deterministic synthetic projector weight: [S, n_grid, 2]
    weight = jax.random.normal(k_w, (sb_input_size, n_grid, 2), jnp.float32)
    weight = weight / jnp.sqrt(jnp.float32(sb_input_size))
    # Module init: spectral_factor = ones(max_r + 1)
    spectral_factor = jnp.ones((max_r + 1,), jnp.float32)
    # Optional data spectra (exercises the per-shell gather)
    data_spectra = 0.5 + jax.random.uniform(k_ds, (max_r + 1,), jnp.float32)

    # Tiling + one-time weight/scale preparation (kept OUT of the hot path).
    tn, n_pad, steps, vmem_est = _tiling(sb_input_size, N, batch)
    vmem_limit = int(min(48 << 20, max(16 << 20, (3 * vmem_est) // 2)))
    w_padded = jax.block_until_ready(prepare_projector_weight(weight, n_pad))
    s_padded = jax.block_until_ready(
        prepare_column_scale(spectral_factor, data_spectra, grid3d_size, n_pad))

    fwd = jax.jit(structure_decoder_forward,
                  static_argnames=("grid3d_size", "tn", "vmem_limit_bytes"))
    out = fwd(sb_input, w_padded, s_padded, grid3d_size=grid3d_size, tn=tn,
              vmem_limit_bytes=vmem_limit)
    out = jax.block_until_ready(out)

    assert out.shape == (batch, L, L, L // 2 + 1, 2), out.shape

    # Tight check vs a reference using the same bf16-quantized operands
    # (isolates kernel logic; only f32 accumulation-order noise remains).
    ref_q = _reference_forward(sb_input, weight, spectral_factor, grid3d_size,
                               data_spectra=data_spectra, quantize_bf16=True)
    assert bool(jnp.allclose(out, ref_q, atol=2e-3, rtol=2e-3)), \
        "mismatch vs bf16-quantized reference"

    # Loose end-to-end check vs the full-f32 reference (covers bf16 weight cast).
    ref = _reference_forward(sb_input, weight, spectral_factor, grid3d_size,
                             data_spectra=data_spectra)
    assert bool(jnp.allclose(out, ref, atol=5e-2, rtol=5e-2)), \
        "mismatch vs f32 reference"

    print("KERNEL_OK")
</pallas_src>

<mosaic_0001>
module attributes {stable_mosaic.version = 11 : i64} {
  func.func @_projector_scale_kernel(%arg0: i32, %arg1: memref<2x32xbf16, #tpu.memory_space<vmem>>, %arg2: memref<32x5248xbf16, #tpu.memory_space<vmem>>, %arg3: memref<1x5248xf32, #tpu.memory_space<vmem>>, %arg4: memref<2x5248xf32, #tpu.memory_space<vmem>>) attributes {dimension_semantics = [#tpu.dimension_semantics<parallel>], iteration_bounds = array<i64: 1>, scalar_prefetch = 0 : i64, scratch_operands = 0 : i64, tpu.core_type = #tpu.core_type<tc>, window_params = [{pipeline_mode = #tpu.pipeline_mode<synchronous>, transform_indices = @transform_0, window_bounds = array<i64: 2, 32>}, {transform_indices = @transform_1, window_bounds = array<i64: 32, 5248>}, {transform_indices = @transform_2, window_bounds = array<i64: 1, 5248>}, {transform_indices = @transform_3, window_bounds = array<i64: 2, 5248>}]} {
    %c0 = arith.constant 0 : index
    %c0_0 = arith.constant 0 : index
    %0 = vector.load %arg1[%c0, %c0_0] : memref<2x32xbf16, #tpu.memory_space<vmem>>, vector<2x32xbf16>
    %c0_1 = arith.constant 0 : index
    %c0_2 = arith.constant 0 : index
    %1 = vector.load %arg2[%c0_1, %c0_2] : memref<32x5248xbf16, #tpu.memory_space<vmem>>, vector<32x5248xbf16>
    %cst = arith.constant dense<0.000000e+00> : vector<2x5248xf32>
    %2 = tpu.matmul %0, %1, %cst {dimension_numbers = #tpu.dot_dimension_numbers<[1], [0], [0], [1], [0, 0, 1, 1], [], []>} : vector<2x32xbf16>, vector<32x5248xbf16>, vector<2x5248xf32> -> vector<2x5248xf32>
    %c0_3 = arith.constant 0 : index
    %c0_4 = arith.constant 0 : index
    %3 = vector.load %arg3[%c0_3, %c0_4] : memref<1x5248xf32, #tpu.memory_space<vmem>>, vector<1x5248xf32>
    %4 = vector.broadcast %3 : vector<1x5248xf32> to vector<2x5248xf32>
    %5 = arith.mulf %2, %4 : vector<2x5248xf32>
    %c0_5 = arith.constant 0 : index
    %c0_6 = arith.constant 0 : index
    %6 = vector.load %arg4[%c0_5, %c0_6] : memref<2x5248xf32, #tpu.memory_space<vmem>>, vector<2x5248xf32>
    tpu.vector_store %arg4[%c0_5, %c0_6], %5 {strides = array<i32>} : memref<2x5248xf32, #tpu.memory_space<vmem>>, vector<2x5248xf32>,
    return
  }
  func.func @transform_0(%arg0: i32) -> (i32, i32) {
    %c0_i32 = arith.constant 0 : i32
    %c0_i32_0 = arith.constant 0 : i32
    %c0_i32_1 = arith.constant 0 : i32
    return %c0_i32, %c0_i32_0 : i32, i32
  }
  func.func @transform_1(%arg0: i32) -> (i32, i32) {
    %c0_i32 = arith.constant 0 : i32
    %c0_i32_0 = arith.constant 0 : i32
    return %c0_i32, %arg0 : i32, i32
  }
  func.func @transform_2(%arg0: i32) -> (i32, i32) {
    %c0_i32 = arith.constant 0 : i32
    %c0_i32_0 = arith.constant 0 : i32
    return %c0_i32, %arg0 : i32, i32
  }
  func.func @transform_3(%arg0: i32) -> (i32, i32) {
    %c0_i32 = arith.constant 0 : i32
    %c0_i32_0 = arith.constant 0 : i32
    return %c0_i32, %arg0 : i32, i32
  }
}

</mosaic_0001>

<llo_original>
// kernel: structure_decoder_forward.1
$region0: #{structure_decoder_forward.1}
  #allocation0 [shape = 'u32[]', space=smem, size = 0x4, offset = 0x4, fixed_abs, tag = 'smem constant byte address 0x4 - core index']
  #allocation1 [shape = 'u32[72,128]{1,0:T(1,128)}', space=vmem, size = 0x9000, scoped, tag = 'internal scratch']
  %s0 = inlined_call_operand.vmem [shape: bf16[2,32], index: 0, kind: input, shape index: {}]
  %s1 = inlined_call_operand.hbm [shape: bf16[32,5248], index: 1, kind: input, shape index: {}]
  %s2 = inlined_call_operand.hbm [shape: f32[1,5248], index: 2, kind: input, shape index: {}]
  %s3 = inlined_call_operand.vmem [shape: f32[2,5202], index: 3, kind: output, shape index: {}]
  %s4 = sld [smem:[#allocation0]]
  $region30: #{structure_decoder_forward.1} parent=0
    _
  %s6 = ssub.s32 1, %s4
  %s7 = scalar_select 0, %s6, %s4
  $region1: #{structure_decoder_forward.1} parent=0
    #allocation2 [shape = 'u8[335872]{0}', space=vmem, size = 0x52000, scoped, tag = 'input window, operand 1, single buffered']
    #allocation3 [shape = 's32[1]{0}', space=sflag, size = 0x4, scoped, tag = 'scoped memory for structure_decoder_forward.1']
    #allocation4 [shape = 'u8[20992]{0}', space=vmem, size = 0x5400, scoped, tag = 'input window, operand 2, single buffered']
    #allocation5 [shape = 's32[1]{0}', space=sflag, size = 0x4, scoped, tag = 'scoped memory for structure_decoder_forward.1']
    %8 = vsyncpa [#allocation3], 0
    %9 = vsyncpa [#allocation5], 0
    // Predicated region
    $region2: #{structure_decoder_forward.1} parent=1 // pred_check
      _
    $region3: #{structure_decoder_forward.1} parent=1 // pred_check_branch
      %11 = sbr.rel (0) target = $region5
    $region4: #{structure_decoder_forward.1} parent=1 // pred_region
      _
    $region5: #{structure_decoder_forward.1} parent=1 // pred_fallthru
      _
    // Predicated region
    $region6: #{structure_decoder_forward.1} parent=1 // pred_check
      _
    $region7: #{structure_decoder_forward.1} parent=1 // pred_check_branch
      %13 = sbr.rel (0) target = $region9
    $region8: #{structure_decoder_forward.1} parent=1 // pred_region
      %15 = vsyncadd [#allocation3], 0
      %s16 = sshll.u32 %s1, 4
      %s17 = int_to_ptr.hbm [resolvable:$true] %s16
      %s18 = sshll.u32 [#allocation2], 4
      %s19 = int_to_ptr.vmem [resolvable:$true] %s18
      %24 = dma.hbm_to_vmem [thread:$0]  %s17, 10496, %s19, [#allocation3], 2624, 2624, 164
    $region9: #{structure_decoder_forward.1} parent=1 // pred_fallthru
      _
    // Predicated region
    $region10: #{structure_decoder_forward.1} parent=1 // pred_check
      _
    $region11: #{structure_decoder_forward.1} parent=1 // pred_check_branch
      %26 = sbr.rel (0) target = $region13
    $region12: #{structure_decoder_forward.1} parent=1 // pred_region
      %28 = vsyncadd [#allocation5], 0
      %s30 = sshll.u32 %s2, 4
      %s31 = int_to_ptr.hbm [resolvable:$true] %s30
      %s32 = sshll.u32 [#allocation4], 4
      %s33 = int_to_ptr.vmem [resolvable:$true] %s32
      %35 = dma.hbm_to_vmem [thread:$0]  %s31, 656, %s33, [#allocation5]
    $region13: #{structure_decoder_forward.1} parent=1 // pred_fallthru
      _
    // Predicated region
    $region14: #{structure_decoder_forward.1} parent=1 // pred_check
      _
    $region15: #{structure_decoder_forward.1} parent=1 // pred_check_branch
      %37 = sbr.rel (0) target = $region17
    $region16: #{structure_decoder_forward.1} parent=1 // pred_region
      %39 = dma.done [#allocation3], 10496
    $region17: #{structure_decoder_forward.1} parent=1 // pred_fallthru
      _
    // Predicated region
    $region18: #{structure_decoder_forward.1} parent=1 // pred_check
      _
    $region19: #{structure_decoder_forward.1} parent=1 // pred_check_branch
      %41 = sbr.rel (0) target = $region21
    $region20: #{structure_decoder_forward.1} parent=1 // pred_region
      %43 = dma.done [#allocation5], 656
    $region21: #{structure_decoder_forward.1} parent=1 // pred_fallthru
      _
    %v45 = vld [vmem:[%s0] sm:$0x1]
    %v46 = vld [vmem:[#allocation2] sm:$0xff]
    %v47 = vld [vmem:[#allocation2 + $0x8] sm:$0xff]
    %v48 = vld [vmem:[#allocation2 + $0x10] sm:$0xff]
    %v49 = vld [vmem:[#allocation2 + $0x18] sm:$0xff]
    %v50 = vld [vmem:[#allocation2 + $0x20] sm:$0xff]
    %v51 = vld [vmem:[#allocation2 + $0x28] sm:$0xff]
    %v52 = vld [vmem:[#allocation2 + $0x30] sm:$0xff]
    %v53 = vld [vmem:[#allocation2 + $0x38] sm:$0xff]
    %v54 = vld [vmem:[#allocation2 + $0x40] sm:$0xff]
    %v55 = vld [vmem:[#allocation2 + $0x48] sm:$0xff]
    %v56 = vld [vmem:[#allocation2 + $0x50] sm:$0xff]
    %v57 = vld [vmem:[#allocation2 + $0x58] sm:$0xff]
    %v58 = vld [vmem:[#allocation2 + $0x60] sm:$0xff]
    %v59 = vld [vmem:[#allocation2 + $0x68] sm:$0xff]
    %v60 = vld [vmem:[#allocation2 + $0x70] sm:$0xff]
    %v61 = vld [vmem:[#allocation2 + $0x78] sm:$0xff]
    %v62 = vld [vmem:[#allocation2 + $0x80] sm:$0xff]
    %v63 = vld [vmem:[#allocation2 + $0x88] sm:$0xff]
    %v64 = vld [vmem:[#allocation2 + $0x90] sm:$0xff]
    %v65 = vld [vmem:[#allocation2 + $0x98] sm:$0xff]
    %v66 = vld [vmem:[#allocation2 + $0xa0] sm:$0xf]
    %v67 = vld [vmem:[#allocation2 + $0xa4] sm:$0xff]
    %v68 = vld [vmem:[#allocation2 + $0xac] sm:$0xff]
    %v69 = vld [vmem:[#allocation2 + $0xb4] sm:$0xff]
    %v70 = vld [vmem:[#allocation2 + $0xbc] sm:$0xff]
    %v71 = vld [vmem:[#allocation2 + $0xc4] sm:$0xff]
    %v72 = vld [vmem:[#allocation2 + $0xcc] sm:$0xff]
    %v73 = vld [vmem:[#allocation2 + $0xd4] sm:$0xff]
    %v74 = vld [vmem:[#allocation2 + $0xdc] sm:$0xff]
    %v75 = vld [vmem:[#allocation2 + $0xe4] sm:$0xff]
    %v76 = vld [vmem:[#allocation2 + $0xec] sm:$0xff]
    %v77 = vld [vmem:[#allocation2 + $0xf4] sm:$0xff]
    %v78 = vld [vmem:[#allocation2 + $0xfc] sm:$0xff]
    %v79 = vld [vmem:[#allocation2 + $0x104] sm:$0xff]
    %v80 = vld [vmem:[#allocation2 + $0x10c] sm:$0xff]
    %v81 = vld [vmem:[#allocation2 + $0x114] sm:$0xff]
    %v82 = vld [vmem:[#allocation2 + $0x11c] sm:$0xff]
    %v83 = vld [vmem:[#allocation2 + $0x124] sm:$0xff]
    %v84 = vld [vmem:[#allocation2 + $0x12c] sm:$0xff]
    %v85 = vld [vmem:[#allocation2 + $0x134] sm:$0xff]
    %v86 = vld [vmem:[#allocation2 + $0x13c] sm:$0xff]
    %v87 = vld [vmem:[#allocation2 + $0x144] sm:$0xf]
    %v88 = vld [vmem:[#allocation2 + $0x148] sm:$0xff]
    %v89 = vld [vmem:[#allocation2 + $0x150] sm:$0xff]
    %v90 = vld [vmem:[#allocation2 + $0x158] sm:$0xff]
    %v91 = vld [vmem:[#allocation2 + $0x160] sm:$0xff]
    %v92 = vld [vmem:[#allocation2 + $0x168] sm:$0xff]
    %v93 = vld [vmem:[#allocation2 + $0x170] sm:$0xff]
    %v94 = vld [vmem:[#allocation2 + $0x178] sm:$0xff]
    %v95 = vld [vmem:[#allocation2 + $0x180] sm:$0xff]
    %v96 = vld [vmem:[#allocation2 + $0x188] sm:$0xff]
    %v97 = vld [vmem:[#allocation2 + $0x190] sm:$0xff]
    %v98 = vld [vmem:[#allocation2 + $0x198] sm:$0xff]
    %v99 = vld [vmem:[#allocation2 + $0x1a0] sm:$0xff]
    %v100 = vld [vmem:[#allocation2 + $0x1a8] sm:$0xff]
    %v101 = vld [vmem:[#allocation2 + $0x1b0] sm:$0xff]
    %v102 = vld [vmem:[#allocation2 + $0x1b8] sm:$0xff]
    %v103 = vld [vmem:[#allocation2 + $0x1c0] sm:$0xff]
    %v104 = vld [vmem:[#allocation2 + $0x1c8] sm:$0xff]
    %v105 = vld [vmem:[#allocation2 + $0x1d0] sm:$0xff]
    %v106 = vld [vmem:[#allocation2 + $0x1d8] sm:$0xff]
    %v107 = vld [vmem:[#allocation2 + $0x1e0] sm:$0xff]
    %v108 = vld [vmem:[#allocation2 + $0x1e8] sm:$0xf]
    %v109 = vld [vmem:[#allocation2 + $0x1ec] sm:$0xff]
    %v110 = vld [vmem:[#allocation2 + $0x1f4] sm:$0xff]
    %v111 = vld [vmem:[#allocation2 + $0x1fc] sm:$0xff]
    %v112 = vld [vmem:[#allocation2 + $0x204] sm:$0xff]
    %v113 = vld [vmem:[#allocation2 + $0x20c] sm:$0xff]
    %v114 = vld [vmem:[#allocation2 + $0x214] sm:$0xff]
    %v115 = vld [vmem:[#allocation2 + $0x21c] sm:$0xff]
    %v116 = vld [vmem:[#allocation2 + $0x224] sm:$0xff]
    %v117 = vld [vmem:[#allocation2 + $0x22c] sm:$0xff]
    %v118 = vld [vmem:[#allocation2 + $0x234] sm:$0xff]
    %v119 = vld [vmem:[#allocation2 + $0x23c] sm:$0xff]
    %v120 = vld [vmem:[#allocation2 + $0x244] sm:$0xff]
    %v121 = vld [vmem:[#allocation2 + $0x24c] sm:$0xff]
    %v122 = vld [vmem:[#allocation2 + $0x254] sm:$0xff]
    %v123 = vld [vmem:[#allocation2 + $0x25c] sm:$0xff]
    %v124 = vld [vmem:[#allocation2 + $0x264] sm:$0xff]
    %v125 = vld [vmem:[#allocation2 + $0x26c] sm:$0xff]
    %v126 = vld [vmem:[#allocation2 + $0x274] sm:$0xff]
    %v127 = vld [vmem:[#allocation2 + $0x27c] sm:$0xff]
    %v128 = vld [vmem:[#allocation2 + $0x284] sm:$0xff]
    %v129 = vld [vmem:[#allocation2 + $0x28c] sm:$0xf]
    %v214 = vunpack.c.l.b16 %v46
    %v215 = vunpack.c.h.b16 %v46
    %v216 = vunpack.c.l.b16 %v47
    %v217 = vunpack.c.h.b16 %v47
    %v218 = vunpack.c.l.b16 %v48
    %v219 = vunpack.c.h.b16 %v48
    %v220 = vunpack.c.l.b16 %v49
    %v221 = vunpack.c.h.b16 %v49
    %v222 = vunpack.c.l.b16 %v50
    %v223 = vunpack.c.h.b16 %v50
    %v224 = vunpack.c.l.b16 %v51
    %v225 = vunpack.c.h.b16 %v51
    %v226 = vunpack.c.l.b16 %v52
    %v227 = vunpack.c.h.b16 %v52
    %v228 = vunpack.c.l.b16 %v53
    %v229 = vunpack.c.h.b16 %v53
    %v230 = vunpack.c.l.b16 %v54
    %v231 = vunpack.c.h.b16 %v54
    %v232 = vunpack.c.l.b16 %v55
    %v233 = vunpack.c.h.b16 %v55
    %v234 = vunpack.c.l.b16 %v56
    %v235 = vunpack.c.h.b16 %v56
    %v236 = vunpack.c.l.b16 %v57
    %v237 = vunpack.c.h.b16 %v57
    %v238 = vunpack.c.l.b16 %v58
    %v239 = vunpack.c.h.b16 %v58
    %v240 = vunpack.c.l.b16 %v59
    %v241 = vunpack.c.h.b16 %v59
    %v242 = vunpack.c.l.b16 %v60
    %v243 = vunpack.c.h.b16 %v60
    %v244 = vunpack.c.l.b16 %v61
    %v245 = vunpack.c.h.b16 %v61
    %v246 = vunpack.c.l.b16 %v62
    %v247 = vunpack.c.h.b16 %v62
    %v248 = vunpack.c.l.b16 %v63
    %v249 = vunpack.c.h.b16 %v63
    %v250 = vunpack.c.l.b16 %v64
    %v251 = vunpack.c.h.b16 %v64
    %v252 = vunpack.c.l.b16 %v65
    %v253 = vunpack.c.h.b16 %v65
    %v254 = vunpack.c.l.b16 %v66
    %v255 = vunpack.c.l.b16 %v67
    %v256 = vunpack.c.h.b16 %v67
    %v257 = vunpack.c.l.b16 %v68
    %v258 = vunpack.c.h.b16 %v68
    %v259 = vunpack.c.l.b16 %v69
    %v260 = vunpack.c.h.b16 %v69
    %v261 = vunpack.c.l.b16 %v70
    %v262 = vunpack.c.h.b16 %v70
    %v263 = vunpack.c.l.b16 %v71
    %v264 = vunpack.c.h.b16 %v71
    %v265 = vunpack.c.l.b16 %v72
    %v266 = vunpack.c.h.b16 %v72
    %v267 = vunpack.c.l.b16 %v73
    %v268 = vunpack.c.h.b16 %v73
    %v269 = vunpack.c.l.b16 %v74
    %v270 = vunpack.c.h.b16 %v74
    %v271 = vunpack.c.l.b16 %v75
    %v272 = vunpack.c.h.b16 %v75
    %v273 = vunpack.c.l.b16 %v76
    %v274 = vunpack.c.h.b16 %v76
    %v275 = vunpack.c.l.b16 %v77
    %v276 = vunpack.c.h.b16 %v77
    %v277 = vunpack.c.l.b16 %v78
    %v278 = vunpack.c.h.b16 %v78
    %v279 = vunpack.c.l.b16 %v79
    %v280 = vunpack.c.h.b16 %v79
    %v281 = vunpack.c.l.b16 %v80
    %v282 = vunpack.c.h.b16 %v80
    %v283 = vunpack.c.l.b16 %v81
    %v284 = vunpack.c.h.b16 %v81
    %v285 = vunpack.c.l.b16 %v82
    %v286 = vunpack.c.h.b16 %v82
    %v287 = vunpack.c.l.b16 %v83
    %v288 = vunpack.c.h.b16 %v83
    %v289 = vunpack.c.l.b16 %v84
    %v290 = vunpack.c.h.b16 %v84
    %v291 = vunpack.c.l.b16 %v85
    %v292 = vunpack.c.h.b16 %v85
    %v293 = vunpack.c.l.b16 %v86
    %v294 = vunpack.c.h.b16 %v86
    %v295 = vunpack.c.l.b16 %v87
    %v296 = vunpack.c.l.b16 %v88
    %v297 = vunpack.c.h.b16 %v88
    %v298 = vunpack.c.l.b16 %v89
    %v299 = vunpack.c.h.b16 %v89
    %v300 = vunpack.c.l.b16 %v90
    %v301 = vunpack.c.h.b16 %v90
    %v302 = vunpack.c.l.b16 %v91
    %v303 = vunpack.c.h.b16 %v91
    %v304 = vunpack.c.l.b16 %v92
    %v305 = vunpack.c.h.b16 %v92
    %v306 = vunpack.c.l.b16 %v93
    %v307 = vunpack.c.h.b16 %v93
    %v308 = vunpack.c.l.b16 %v94
    %v309 = vunpack.c.h.b16 %v94
    %v310 = vunpack.c.l.b16 %v95
    %v311 = vunpack.c.h.b16 %v95
    %v312 = vunpack.c.l.b16 %v96
    %v313 = vunpack.c.h.b16 %v96
    %v314 = vunpack.c.l.b16 %v97
    %v315 = vunpack.c.h.b16 %v97
    %v316 = vunpack.c.l.b16 %v98
    %v317 = vunpack.c.h.b16 %v98
    %v318 = vunpack.c.l.b16 %v99
    %v319 = vunpack.c.h.b16 %v99
    %v320 = vunpack.c.l.b16 %v100
    %v321 = vunpack.c.h.b16 %v100
    %v322 = vunpack.c.l.b16 %v101
    %v323 = vunpack.c.h.b16 %v101
    %v324 = vunpack.c.l.b16 %v102
    %v325 = vunpack.c.h.b16 %v102
    %v326 = vunpack.c.l.b16 %v103
    %v327 = vunpack.c.h.b16 %v103
    %v328 = vunpack.c.l.b16 %v104
    %v329 = vunpack.c.h.b16 %v104
    %v330 = vunpack.c.l.b16 %v105
    %v331 = vunpack.c.h.b16 %v105
    %v332 = vunpack.c.l.b16 %v106
    %v333 = vunpack.c.h.b16 %v106
    %v334 = vunpack.c.l.b16 %v107
    %v335 = vunpack.c.h.b16 %v107
    %v336 = vunpack.c.l.b16 %v108
    %v337 = vunpack.c.l.b16 %v109
    %v338 = vunpack.c.h.b16 %v109
    %v339 = vunpack.c.l.b16 %v110
    %v340 = vunpack.c.h.b16 %v110
    %v341 = vunpack.c.l.b16 %v111
    %v342 = vunpack.c.h.b16 %v111
    %v343 = vunpack.c.l.b16 %v112
    %v344 = vunpack.c.h.b16 %v112
    %v345 = vunpack.c.l.b16 %v113
    %v346 = vunpack.c.h.b16 %v113
    %v347 = vunpack.c.l.b16 %v114
    %v348 = vunpack.c.h.b16 %v114
    %v349 = vunpack.c.l.b16 %v115
    %v350 = vunpack.c.h.b16 %v115
    %v351 = vunpack.c.l.b16 %v116
    %v352 = vunpack.c.h.b16 %v116
    %v353 = vunpack.c.l.b16 %v117
    %v354 = vunpack.c.h.b16 %v117
    %v355 = vunpack.c.l.b16 %v118
    %v356 = vunpack.c.h.b16 %v118
    %v357 = vunpack.c.l.b16 %v119
    %v358 = vunpack.c.h.b16 %v119
    %v359 = vunpack.c.l.b16 %v120
    %v360 = vunpack.c.h.b16 %v120
    %v361 = vunpack.c.l.b16 %v121
    %v362 = vunpack.c.h.b16 %v121
    %v363 = vunpack.c.l.b16 %v122
    %v364 = vunpack.c.h.b16 %v122
    %v365 = vunpack.c.l.b16 %v123
    %v366 = vunpack.c.h.b16 %v123
    %v367 = vunpack.c.l.b16 %v124
    %v368 = vunpack.c.h.b16 %v124
    %v369 = vunpack.c.l.b16 %v125
    %v370 = vunpack.c.h.b16 %v125
    %v371 = vunpack.c.l.b16 %v126
    %v372 = vunpack.c.h.b16 %v126
    %v373 = vunpack.c.l.b16 %v127
    %v374 = vunpack.c.h.b16 %v127
    %v375 = vunpack.c.l.b16 %v128
    %v376 = vunpack.c.h.b16 %v128
    %v377 = vunpack.c.l.b16 %v129
    %v378 = vpack.c.b16 %v255, %v214
    %v379 = vpack.c.b16 %v256, %v215
    %v380 = vpack.c.b16 %v257, %v216
    %v381 = vpack.c.b16 %v258, %v217
    %v382 = vpack.c.b16 %v259, %v218
    %v383 = vpack.c.b16 %v260, %v219
    %v384 = vpack.c.b16 %v261, %v220
    %v385 = vpack.c.b16 %v262, %v221
    %v386 = vpack.c.b16 %v263, %v222
    %v387 = vpack.c.b16 %v264, %v223
    %v388 = vpack.c.b16 %v265, %v224
    %v389 = vpack.c.b16 %v266, %v225
    %v390 = vpack.c.b16 %v267, %v226
    %v391 = vpack.c.b16 %v268, %v227
    %v392 = vpack.c.b16 %v269, %v228
    %v393 = vpack.c.b16 %v270, %v229
    %v394 = vpack.c.b16 %v271, %v230
    %v395 = vpack.c.b16 %v272, %v231
    %v396 = vpack.c.b16 %v273, %v232
    %v397 = vpack.c.b16 %v274, %v233
    %v398 = vpack.c.b16 %v275, %v234
    %v399 = vpack.c.b16 %v276, %v235
    %v400 = vpack.c.b16 %v277, %v236
    %v401 = vpack.c.b16 %v278, %v237
    %v402 = vpack.c.b16 %v279, %v238
    %v403 = vpack.c.b16 %v280, %v239
    %v404 = vpack.c.b16 %v281, %v240
    %v405 = vpack.c.b16 %v282, %v241
    %v406 = vpack.c.b16 %v283, %v242
    %v407 = vpack.c.b16 %v284, %v243
    %v408 = vpack.c.b16 %v285, %v244
    %v409 = vpack.c.b16 %v286, %v245
    %v410 = vpack.c.b16 %v287, %v246
    %v411 = vpack.c.b16 %v288, %v247
    %v412 = vpack.c.b16 %v289, %v248
    %v413 = vpack.c.b16 %v290, %v249
    %v414 = vpack.c.b16 %v291, %v250
    %v415 = vpack.c.b16 %v292, %v251
    %v416 = vpack.c.b16 %v293, %v252
    %v417 = vpack.c.b16 %v294, %v253
    %v418 = vpack.c.b16 %v295, %v254
    %v419 = vpack.c.b16 %v337, %v296
    %v420 = vpack.c.b16 %v338, %v297
    %v421 = vpack.c.b16 %v339, %v298
    %v422 = vpack.c.b16 %v340, %v299
    %v423 = vpack.c.b16 %v341, %v300
    %v424 = vpack.c.b16 %v342, %v301
    %v425 = vpack.c.b16 %v343, %v302
    %v426 = vpack.c.b16 %v344, %v303
    %v427 = vpack.c.b16 %v345, %v304
    %v428 = vpack.c.b16 %v346, %v305
    %v429 = vpack.c.b16 %v347, %v306
    %v430 = vpack.c.b16 %v348, %v307
    %v431 = vpack.c.b16 %v349, %v308
    %v432 = vpack.c.b16 %v350, %v309
    %v433 = vpack.c.b16 %v351, %v310
    %v434 = vpack.c.b16 %v352, %v311
    %v435 = vpack.c.b16 %v353, %v312
    %v436 = vpack.c.b16 %v354, %v313
    %v437 = vpack.c.b16 %v355, %v314
    %v438 = vpack.c.b16 %v356, %v315
    %v439 = vpack.c.b16 %v357, %v316
    %v440 = vpack.c.b16 %v358, %v317
    %v441 = vpack.c.b16 %v359, %v318
    %v442 = vpack.c.b16 %v360, %v319
    %v443 = vpack.c.b16 %v361, %v320
    %v444 = vpack.c.b16 %v362, %v321
    %v445 = vpack.c.b16 %v363, %v322
    %v446 = vpack.c.b16 %v364, %v323
    %v447 = vpack.c.b16 %v365, %v324
    %v448 = vpack.c.b16 %v366, %v325
    %v449 = vpack.c.b16 %v367, %v326
    %v450 = vpack.c.b16 %v368, %v327
    %v451 = vpack.c.b16 %v369, %v328
    %v452 = vpack.c.b16 %v370, %v329
    %v453 = vpack.c.b16 %v371, %v330
    %v454 = vpack.c.b16 %v372, %v331
    %v455 = vpack.c.b16 %v373, %v332
    %v456 = vpack.c.b16 %v374, %v333
    %v457 = vpack.c.b16 %v375, %v334
    %v458 = vpack.c.b16 %v376, %v335
    %v459 = vpack.c.b16 %v377, %v336
    %vm542 = vcmask 261120
    %v544 = vsel %vm542, %v45, 0
    %546 = vmatpush.bf16.msra.mxu0 0
    %547 = vmatpush.bf16.msra.mxu0 0
    %548 = vmatpush.bf16.msra.mxu0 0
    %549 = vmatpush.bf16.msra.mxu0 0
    %550 = vmatpush.bf16.msra.mxu0 0
    %551 = vmatpush.bf16.msra.mxu0 0
    %552 = vmatpush.bf16.msra.mxu0 %v419
    %553 = vmatpush.bf16.msra.mxu0 %v378
    %554 = vmatmul.bf16.gmra.mxu0 %v544
    %v555 = vpop.f32.mrf.mxu0
    %v556 = vadd.f32 0.0, %v555
    %v557 = vpop.f32.mrf.mxu0
    %558 = vdwg.mxu0
    %559 = vmatpush.bf16.msra.mxu0 0
    %560 = vmatpush.bf16.msra.mxu0 0
    %561 = vmatpush.bf16.msra.mxu0 0
    %562 = vmatpush.bf16.msra.mxu0 0
    %563 = vmatpush.bf16.msra.mxu0 0
    %564 = vmatpush.bf16.msra.mxu0 0
    %565 = vmatpush.bf16.msra.mxu0 %v420
    %566 = vmatpush.bf16.msra.mxu0 %v379
    %567 = vmatmul.bf16.gmra.mxu0 %v544
    %v568 = vpop.f32.mrf.mxu0
    %v569 = vadd.f32 0.0, %v568
    %v570 = vpop.f32.mrf.mxu0
    %571 = vdwg.mxu0
    %572 = vmatpush.bf16.msra.mxu0 0
    %573 = vmatpush.bf16.msra.mxu0 0
    %574 = vmatpush.bf16.msra.mxu0 0
    %575 = vmatpush.bf16.msra.mxu0 0
    %576 = vmatpush.bf16.msra.mxu0 0
    %577 = vmatpush.bf16.msra.mxu0 0
    %578 = vmatpush.bf16.msra.mxu0 %v421
    %579 = vmatpush.bf16.msra.mxu0 %v380
    %580 = vmatmul.bf16.gmra.mxu0 %v544
    %v581 = vpop.f32.mrf.mxu0
    %v582 = vadd.f32 0.0, %v581
    %v583 = vpop.f32.mrf.mxu0
    %584 = vdwg.mxu0
    %585 = vmatpush.bf16.msra.mxu0 0
    %586 = vmatpush.bf16.msra.mxu0 0
    %587 = vmatpush.bf16.msra.mxu0 0
    %588 = vmatpush.bf16.msra.mxu0 0
    %589 = vmatpush.bf16.msra.mxu0 0
    %590 = vmatpush.bf16.msra.mxu0 0
    %591 = vmatpush.bf16.msra.mxu0 %v422
    %592 = vmatpush.bf16.msra.mxu0 %v381
    %593 = vmatmul.bf16.gmra.mxu0 %v544
    %v594 = vpop.f32.mrf.mxu0
    %v595 = vadd.f32 0.0, %v594
    %v596 = vpop.f32.mrf.mxu0
    %597 = vdwg.mxu0
    %598 = vmatpush.bf16.msra.mxu0 0
    %599 = vmatpush.bf16.msra.mxu0 0
    %600 = vmatpush.bf16.msra.mxu0 0
    %601 = vmatpush.bf16.msra.mxu0 0
    %602 = vmatpush.bf16.msra.mxu0 0
    %603 = vmatpush.bf16.msra.mxu0 0
    %604 = vmatpush.bf16.msra.mxu0 %v423
    %605 = vmatpush.bf16.msra.mxu0 %v382
    %606 = vmatmul.bf16.gmra.mxu0 %v544
    %v607 = vpop.f32.mrf.mxu0
    %v608 = vadd.f32 0.0, %v607
    %v609 = vpop.f32.mrf.mxu0
    %610 = vdwg.mxu0
    %611 = vmatpush.bf16.msra.mxu0 0
    %612 = vmatpush.bf16.msra.mxu0 0
    %613 = vmatpush.bf16.msra.mxu0 0
    %614 = vmatpush.bf16.msra.mxu0 0
    %615 = vmatpush.bf16.msra.mxu0 0
    %616 = vmatpush.bf16.msra.mxu0 0
    %617 = vmatpush.bf16.msra.mxu0 %v424
    %618 = vmatpush.bf16.msra.mxu0 %v383
    %619 = vmatmul.bf16.gmra.mxu0 %v544
    %v620 = vpop.f32.mrf.mxu0
    %v621 = vadd.f32 0.0, %v620
    %v622 = vpop.f32.mrf.mxu0
    %623 = vdwg.mxu0
    %624 = vmatpush.bf16.msra.mxu0 0
    %625 = vmatpush.bf16.msra.mxu0 0
    %626 = vmatpush.bf16.msra.mxu0 0
    %627 = vmatpush.bf16.msra.mxu0 0
    %628 = vmatpush.bf16.msra.mxu0 0
    %629 = vmatpush.bf16.msra.mxu0 0
    %630 = vmatpush.bf16.msra.mxu0 %v425
    %631 = vmatpush.bf16.msra.mxu0 %v384
    %632 = vmatmul.bf16.gmra.mxu0 %v544
    %v633 = vpop.f32.mrf.mxu0
    %v634 = vadd.f32 0.0, %v633
    %v635 = vpop.f32.mrf.mxu0
    %636 = vdwg.mxu0
    %637 = vmatpush.bf16.msra.mxu0 0
    %638 = vmatpush.bf16.msra.mxu0 0
    %639 = vmatpush.bf16.msra.mxu0 0
    %640 = vmatpush.bf16.msra.mxu0 0
    %641 = vmatpush.bf16.msra.mxu0 0
    %642 = vmatpush.bf16.msra.mxu0 0
    %643 = vmatpush.bf16.msra.mxu0 %v426
    %644 = vmatpush.bf16.msra.mxu0 %v385
    %645 = vmatmul.bf16.gmra.mxu0 %v544
    %v646 = vpop.f32.mrf.mxu0
    %v647 = vadd.f32 0.0, %v646
    %v648 = vpop.f32.mrf.mxu0
    %649 = vdwg.mxu0
    %650 = vmatpush.bf16.msra.mxu0 0
    %651 = vmatpush.bf16.msra.mxu0 0
    %652 = vmatpush.bf16.msra.mxu0 0
    %653 = vmatpush.bf16.msra.mxu0 0
    %654 = vmatpush.bf16.msra.mxu0 0
    %655 = vmatpush.bf16.msra.mxu0 0
    %656 = vmatpush.bf16.msra.mxu0 %v427
    %657 = vmatpush.bf16.msra.mxu0 %v386
    %658 = vmatmul.bf16.gmra.mxu0 %v544
    %v659 = vpop.f32.mrf.mxu0
    %v660 = vadd.f32 0.0, %v659
    %v661 = vpop.f32.mrf.mxu0
    %662 = vdwg.mxu0
    %663 = vmatpush.bf16.msra.mxu0 0
    %664 = vmatpush.bf16.msra.mxu0 0
    %665 = vmatpush.bf16.msra.mxu0 0
    %666 = vmatpush.bf16.msra.mxu0 0
    %667 = vmatpush.bf16.msra.mxu0 0
    %668 = vmatpush.bf16.msra.mxu0 0
    %669 = vmatpush.bf16.msra.mxu0 %v428
    %670 = vmatpush.bf16.msra.mxu0 %v387
    %671 = vmatmul.bf16.gmra.mxu0 %v544
    %v672 = vpop.f32.mrf.mxu0
    %v673 = vadd.f32 0.0, %v672
    %v674 = vpop.f32.mrf.mxu0
    %675 = vdwg.mxu0
    %676 = vmatpush.bf16.msra.mxu0 0
    %677 = vmatpush.bf16.msra.mxu0 0
    %678 = vmatpush.bf16.msra.mxu0 0
    %679 = vmatpush.bf16.msra.mxu0 0
    %680 = vmatpush.bf16.msra.mxu0 0
    %681 = vmatpush.bf16.msra.mxu0 0
    %682 = vmatpush.bf16.msra.mxu0 %v429
    %683 = vmatpush.bf16.msra.mxu0 %v388
    %684 = vmatmul.bf16.gmra.mxu0 %v544
    %v685 = vpop.f32.mrf.mxu0
    %v686 = vadd.f32 0.0, %v685
    %v687 = vpop.f32.mrf.mxu0
    %688 = vdwg.mxu0
    %689 = vmatpush.bf16.msra.mxu0 0
    %690 = vmatpush.bf16.msra.mxu0 0
    %691 = vmatpush.bf16.msra.mxu0 0
    %692 = vmatpush.bf16.msra.mxu0 0
    %693 = vmatpush.bf16.msra.mxu0 0
    %694 = vmatpush.bf16.msra.mxu0 0
    %695 = vmatpush.bf16.msra.mxu0 %v430
    %696 = vmatpush.bf16.msra.mxu0 %v389
    %697 = vmatmul.bf16.gmra.mxu0 %v544
    %v698 = vpop.f32.mrf.mxu0
    %v699 = vadd.f32 0.0, %v698
    %v700 = vpop.f32.mrf.mxu0
    %701 = vdwg.mxu0
    %702 = vmatpush.bf16.msra.mxu0 0
    %703 = vmatpush.bf16.msra.mxu0 0
    %704 = vmatpush.bf16.msra.mxu0 0
    %705 = vmatpush.bf16.msra.mxu0 0
    %706 = vmatpush.bf16.msra.mxu0 0
    %707 = vmatpush.bf16.msra.mxu0 0
    %708 = vmatpush.bf16.msra.mxu0 %v431
    %709 = vmatpush.bf16.msra.mxu0 %v390
    %710 = vmatmul.bf16.gmra.mxu0 %v544
    %v711 = vpop.f32.mrf.mxu0
    %v712 = vadd.f32 0.0, %v711
    %v713 = vpop.f32.mrf.mxu0
    %714 = vdwg.mxu0
    %715 = vmatpush.bf16.msra.mxu0 0
    %716 = vmatpush.bf16.msra.mxu0 0
    %717 = vmatpush.bf16.msra.mxu0 0
    %718 = vmatpush.bf16.msra.mxu0 0
    %719 = vmatpush.bf16.msra.mxu0 0
    %720 = vmatpush.bf16.msra.mxu0 0
    %721 = vmatpush.bf16.msra.mxu0 %v432
    %722 = vmatpush.bf16.msra.mxu0 %v391
    %723 = vmatmul.bf16.gmra.mxu0 %v544
    %v724 = vpop.f32.mrf.mxu0
    %v725 = vadd.f32 0.0, %v724
    %v726 = vpop.f32.mrf.mxu0
    %727 = vdwg.mxu0
    %728 = vmatpush.bf16.msra.mxu0 0
    %729 = vmatpush.bf16.msra.mxu0 0
    %730 = vmatpush.bf16.msra.mxu0 0
    %731 = vmatpush.bf16.msra.mxu0 0
    %732 = vmatpush.bf16.msra.mxu0 0
    %733 = vmatpush.bf16.msra.mxu0 0
    %734 = vmatpush.bf16.msra.mxu0 %v433
    %735 = vmatpush.bf16.msra.mxu0 %v392
    %736 = vmatmul.bf16.gmra.mxu0 %v544
    %v737 = vpop.f32.mrf.mxu0
    %v738 = vadd.f32 0.0, %v737
    %v739 = vpop.f32.mrf.mxu0
    %740 = vdwg.mxu0
    %741 = vmatpush.bf16.msra.mxu0 0
    %742 = vmatpush.bf16.msra.mxu0 0
    %743 = vmatpush.bf16.msra.mxu0 0
    %744 = vmatpush.bf16.msra.mxu0 0
    %745 = vmatpush.bf16.msra.mxu0 0
    %746 = vmatpush.bf16.msra.mxu0 0
    %747 = vmatpush.bf16.msra.mxu0 %v434
    %748 = vmatpush.bf16.msra.mxu0 %v393
    %749 = vmatmul.bf16.gmra.mxu0 %v544
    %v750 = vpop.f32.mrf.mxu0
    %v751 = vadd.f32 0.0, %v750
    %v752 = vpop.f32.mrf.mxu0
    %753 = vdwg.mxu0
    %754 = vmatpush.bf16.msra.mxu0 0
    %755 = vmatpush.bf16.msra.mxu0 0
    %756 = vmatpush.bf16.msra.mxu0 0
    %757 = vmatpush.bf16.msra.mxu0 0
    %758 = vmatpush.bf16.msra.mxu0 0
    %759 = vmatpush.bf16.msra.mxu0 0
    %760 = vmatpush.bf16.msra.mxu0 %v435
    %761 = vmatpush.bf16.msra.mxu0 %v394
    %762 = vmatmul.bf16.gmra.mxu0 %v544
    %v763 = vpop.f32.mrf.mxu0
    %v764 = vadd.f32 0.0, %v763
    %v765 = vpop.f32.mrf.mxu0
    %766 = vdwg.mxu0
    %767 = vmatpush.bf16.msra.mxu0 0
    %768 = vmatpush.bf16.msra.mxu0 0
    %769 = vmatpush.bf16.msra.mxu0 0
    %770 = vmatpush.bf16.msra.mxu0 0
    %771 = vmatpush.bf16.msra.mxu0 0
    %772 = vmatpush.bf16.msra.mxu0 0
    %773 = vmatpush.bf16.msra.mxu0 %v436
    %774 = vmatpush.bf16.msra.mxu0 %v395
    %775 = vmatmul.bf16.gmra.mxu0 %v544
    %v776 = vpop.f32.mrf.mxu0
    %v777 = vadd.f32 0.0, %v776
    %v778 = vpop.f32.mrf.mxu0
    %779 = vdwg.mxu0
    %780 = vmatpush.bf16.msra.mxu0 0
    %781 = vmatpush.bf16.msra.mxu0 0
    %782 = vmatpush.bf16.msra.mxu0 0
    %783 = vmatpush.bf16.msra.mxu0 0
    %784 = vmatpush.bf16.msra.mxu0 0
    %785 = vmatpush.bf16.msra.mxu0 0
    %786 = vmatpush.bf16.msra.mxu0 %v437
    %787 = vmatpush.bf16.msra.mxu0 %v396
    %788 = vmatmul.bf16.gmra.mxu0 %v544
    %v789 = vpop.f32.mrf.mxu0
    %v790 = vadd.f32 0.0, %v789
    %v791 = vpop.f32.mrf.mxu0
    %792 = vdwg.mxu0
    %793 = vmatpush.bf16.msra.mxu0 0
    %794 = vmatpush.bf16.msra.mxu0 0
    %795 = vmatpush.bf16.msra.mxu0 0
    %796 = vmatpush.bf16.msra.mxu0 0
    %797 = vmatpush.bf16.msra.mxu0 0
    %798 = vmatpush.bf16.msra.mxu0 0
    %799 = vmatpush.bf16.msra.mxu0 %v438
    %800 = vmatpush.bf16.msra.mxu0 %v397
    %801 = vmatmul.bf16.gmra.mxu0 %v544
    %v802 = vpop.f32.mrf.mxu0
    %v803 = vadd.f32 0.0, %v802
    %v804 = vpop.f32.mrf.mxu0
    %805 = vdwg.mxu0
    %806 = vmatpush.bf16.msra.mxu0 0
    %807 = vmatpush.bf16.msra.mxu0 0
    %808 = vmatpush.bf16.msra.mxu0 0
    %809 = vmatpush.bf16.msra.mxu0 0
    %810 = vmatpush.bf16.msra.mxu0 0
    %811 = vmatpush.bf16.msra.mxu0 0
    %812 = vmatpush.bf16.msra.mxu0 %v439
    %813 = vmatpush.bf16.msra.mxu0 %v398
    %814 = vmatmul.bf16.gmra.mxu0 %v544
    %v815 = vpop.f32.mrf.mxu0
    %v816 = vadd.f32 0.0, %v815
    %v817 = vpop.f32.mrf.mxu0
    %818 = vdwg.mxu0
    %819 = vmatpush.bf16.msra.mxu0 0
    %820 = vmatpush.bf16.msra.mxu0 0
    %821 = vmatpush.bf16.msra.mxu0 0
    %822 = vmatpush.bf16.msra.mxu0 0
    %823 = vmatpush.bf16.msra.mxu0 0
    %824 = vmatpush.bf16.msra.mxu0 0
    %825 = vmatpush.bf16.msra.mxu0 %v440
    %826 = vmatpush.bf16.msra.mxu0 %v399
    %827 = vmatmul.bf16.gmra.mxu0 %v544
    %v828 = vpop.f32.mrf.mxu0
    %v829 = vadd.f32 0.0, %v828
    %v830 = vpop.f32.mrf.mxu0
    %831 = vdwg.mxu0
    %832 = vmatpush.bf16.msra.mxu0 0
    %833 = vmatpush.bf16.msra.mxu0 0
    %834 = vmatpush.bf16.msra.mxu0 0
    %835 = vmatpush.bf16.msra.mxu0 0
    %836 = vmatpush.bf16.msra.mxu0 0
    %837 = vmatpush.bf16.msra.mxu0 0
    %838 = vmatpush.bf16.msra.mxu0 %v441
    %839 = vmatpush.bf16.msra.mxu0 %v400
    %840 = vmatmul.bf16.gmra.mxu0 %v544
    %v841 = vpop.f32.mrf.mxu0
    %v842 = vadd.f32 0.0, %v841
    %v843 = vpop.f32.mrf.mxu0
    %844 = vdwg.mxu0
    %845 = vmatpush.bf16.msra.mxu0 0
    %846 = vmatpush.bf16.msra.mxu0 0
    %847 = vmatpush.bf16.msra.mxu0 0
    %848 = vmatpush.bf16.msra.mxu0 0
    %849 = vmatpush.bf16.msra.mxu0 0
    %850 = vmatpush.bf16.msra.mxu0 0
    %851 = vmatpush.bf16.msra.mxu0 %v442
    %852 = vmatpush.bf16.msra.mxu0 %v401
    %853 = vmatmul.bf16.gmra.mxu0 %v544
    %v854 = vpop.f32.mrf.mxu0
    %v855 = vadd.f32 0.0, %v854
    %v856 = vpop.f32.mrf.mxu0
    %857 = vdwg.mxu0
    %858 = vmatpush.bf16.msra.mxu0 0
    %859 = vmatpush.bf16.msra.mxu0 0
    %860 = vmatpush.bf16.msra.mxu0 0
    %861 = vmatpush.bf16.msra.mxu0 0
    %862 = vmatpush.bf16.msra.mxu0 0
    %863 = vmatpush.bf16.msra.mxu0 0
    %864 = vmatpush.bf16.msra.mxu0 %v443
    %865 = vmatpush.bf16.msra.mxu0 %v402
    %866 = vmatmul.bf16.gmra.mxu0 %v544
    %v867 = vpop.f32.mrf.mxu0
    %v868 = vadd.f32 0.0, %v867
    %v869 = vpop.f32.mrf.mxu0
    %870 = vdwg.mxu0
    %871 = vmatpush.bf16.msra.mxu0 0
    %872 = vmatpush.bf16.msra.mxu0 0
    %873 = vmatpush.bf16.msra.mxu0 0
    %874 = vmatpush.bf16.msra.mxu0 0
    %875 = vmatpush.bf16.msra.mxu0 0
    %876 = vmatpush.bf16.msra.mxu0 0
    %877 = vmatpush.bf16.msra.mxu0 %v444
    %878 = vmatpush.bf16.msra.mxu0 %v403
    %879 = vmatmul.bf16.gmra.mxu0 %v544
    %v880 = vpop.f32.mrf.mxu0
    %v881 = vadd.f32 0.0, %v880
    %v882 = vpop.f32.mrf.mxu0
    %883 = vdwg.mxu0
    %884 = vmatpush.bf16.msra.mxu0 0
    %885 = vmatpush.bf16.msra.mxu0 0
    %886 = vmatpush.bf16.msra.mxu0 0
    %887 = vmatpush.bf16.msra.mxu0 0
    %888 = vmatpush.bf16.msra.mxu0 0
    %889 = vmatpush.bf16.msra.mxu0 0
    %890 = vmatpush.bf16.msra.mxu0 %v445
    %891 = vmatpush.bf16.msra.mxu0 %v404
    %892 = vmatmul.bf16.gmra.mxu0 %v544
    %v893 = vpop.f32.mrf.mxu0
    %v894 = vadd.f32 0.0, %v893
    %v895 = vpop.f32.mrf.mxu0
    %896 = vdwg.mxu0
    %897 = vmatpush.bf16.msra.mxu0 0
    %898 = vmatpush.bf16.msra.mxu0 0
    %899 = vmatpush.bf16.msra.mxu0 0
    %900 = vmatpush.bf16.msra.mxu0 0
    %901 = vmatpush.bf16.msra.mxu0 0
    %902 = vmatpush.bf16.msra.mxu0 0
    %903 = vmatpush.bf16.msra.mxu0 %v446
    %904 = vmatpush.bf16.msra.mxu0 %v405
    %905 = vmatmul.bf16.gmra.mxu0 %v544
    %v906 = vpop.f32.mrf.mxu0
    %v907 = vadd.f32 0.0, %v906
    %v908 = vpop.f32.mrf.mxu0
    %909 = vdwg.mxu0
    %910 = vmatpush.bf16.msra.mxu0 0
    %911 = vmatpush.bf16.msra.mxu0 0
    %912 = vmatpush.bf16.msra.mxu0 0
    %913 = vmatpush.bf16.msra.mxu0 0
    %914 = vmatpush.bf16.msra.mxu0 0
    %915 = vmatpush.bf16.msra.mxu0 0
    %916 = vmatpush.bf16.msra.mxu0 %v447
    %917 = vmatpush.bf16.msra.mxu0 %v406
    %918 = vmatmul.bf16.gmra.mxu0 %v544
    %v919 = vpop.f32.mrf.mxu0
    %v920 = vadd.f32 0.0, %v919
    %v921 = vpop.f32.mrf.mxu0
    %922 = vdwg.mxu0
    %923 = vmatpush.bf16.msra.mxu0 0
    %924 = vmatpush.bf16.msra.mxu0 0
    %925 = vmatpush.bf16.msra.mxu0 0
    %926 = vmatpush.bf16.msra.mxu0 0
    %927 = vmatpush.bf16.msra.mxu0 0
    %928 = vmatpush.bf16.msra.mxu0 0
    %929 = vmatpush.bf16.msra.mxu0 %v448
    %930 = vmatpush.bf16.msra.mxu0 %v407
    %931 = vmatmul.bf16.gmra.mxu0 %v544
    %v932 = vpop.f32.mrf.mxu0
    %v933 = vadd.f32 0.0, %v932
    %v934 = vpop.f32.mrf.mxu0
    %935 = vdwg.mxu0
    %936 = vmatpush.bf16.msra.mxu0 0
    %937 = vmatpush.bf16.msra.mxu0 0
    %938 = vmatpush.bf16.msra.mxu0 0
    %939 = vmatpush.bf16.msra.mxu0 0
    %940 = vmatpush.bf16.msra.mxu0 0
    %941 = vmatpush.bf16.msra.mxu0 0
    %942 = vmatpush.bf16.msra.mxu0 %v449
    %943 = vmatpush.bf16.msra.mxu0 %v408
    %944 = vmatmul.bf16.gmra.mxu0 %v544
    %v945 = vpop.f32.mrf.mxu0
    %v946 = vadd.f32 0.0, %v945
    %v947 = vpop.f32.mrf.mxu0
    %948 = vdwg.mxu0
    %949 = vmatpush.bf16.msra.mxu0 0
    %950 = vmatpush.bf16.msra.mxu0 0
    %951 = vmatpush.bf16.msra.mxu0 0
    %952 = vmatpush.bf16.msra.mxu0 0
    %953 = vmatpush.bf16.msra.mxu0 0
    %954 = vmatpush.bf16.msra.mxu0 0
    %955 = vmatpush.bf16.msra.mxu0 %v450
    %956 = vmatpush.bf16.msra.mxu0 %v409
    %957 = vmatmul.bf16.gmra.mxu0 %v544
    %v958 = vpop.f32.mrf.mxu0
    %v959 = vadd.f32 0.0, %v958
    %v960 = vpop.f32.mrf.mxu0
    %961 = vdwg.mxu0
    %962 = vmatpush.bf16.msra.mxu0 0
    %963 = vmatpush.bf16.msra.mxu0 0
    %964 = vmatpush.bf16.msra.mxu0 0
    %965 = vmatpush.bf16.msra.mxu0 0
    %966 = vmatpush.bf16.msra.mxu0 0
    %967 = vmatpush.bf16.msra.mxu0 0
    %968 = vmatpush.bf16.msra.mxu0 %v451
    %969 = vmatpush.bf16.msra.mxu0 %v410
    %970 = vmatmul.bf16.gmra.mxu0 %v544
    %v971 = vpop.f32.mrf.mxu0
    %v972 = vadd.f32 0.0, %v971
    %v973 = vpop.f32.mrf.mxu0
    %974 = vdwg.mxu0
    %975 = vmatpush.bf16.msra.mxu0 0
    %976 = vmatpush.bf16.msra.mxu0 0
    %977 = vmatpush.bf16.msra.mxu0 0
    %978 = vmatpush.bf16.msra.mxu0 0
    %979 = vmatpush.bf16.msra.mxu0 0
    %980 = vmatpush.bf16.msra.mxu0 0
    %981 = vmatpush.bf16.msra.mxu0 %v452
    %982 = vmatpush.bf16.msra.mxu0 %v411
    %983 = vmatmul.bf16.gmra.mxu0 %v544
    %v984 = vpop.f32.mrf.mxu0
    %v985 = vadd.f32 0.0, %v984
    %v986 = vpop.f32.mrf.mxu0
    %987 = vdwg.mxu0
    %988 = vmatpush.bf16.msra.mxu0 0
    %989 = vmatpush.bf16.msra.mxu0 0
    %990 = vmatpush.bf16.msra.mxu0 0
    %991 = vmatpush.bf16.msra.mxu0 0
    %992 = vmatpush.bf16.msra.mxu0 0
    %993 = vmatpush.bf16.msra.mxu0 0
    %994 = vmatpush.bf16.msra.mxu0 %v453
    %995 = vmatpush.bf16.msra.mxu0 %v412
    %996 = vmatmul.bf16.gmra.mxu0 %v544
    %v997 = vpop.f32.mrf.mxu0
    %v998 = vadd.f32 0.0, %v997
    %v999 = vpop.f32.mrf.mxu0
    %1000 = vdwg.mxu0
    %1001 = vmatpush.bf16.msra.mxu0 0
    %1002 = vmatpush.bf16.msra.mxu0 0
    %1003 = vmatpush.bf16.msra.mxu0 0
    %1004 = vmatpush.bf16.msra.mxu0 0
    %1005 = vmatpush.bf16.msra.mxu0 0
    %1006 = vmatpush.bf16.msra.mxu0 0
    %1007 = vmatpush.bf16.msra.mxu0 %v454
    %1008 = vmatpush.bf16.msra.mxu0 %v413
    %1009 = vmatmul.bf16.gmra.mxu0 %v544
    %v1010 = vpop.f32.mrf.mxu0
    %v1011 = vadd.f32 0.0, %v1010
    %v1012 = vpop.f32.mrf.mxu0
    %1013 = vdwg.mxu0
    %1014 = vmatpush.bf16.msra.mxu0 0
    %1015 = vmatpush.bf16.msra.mxu0 0
    %1016 = vmatpush.bf16.msra.mxu0 0
    %1017 = vmatpush.bf16.msra.mxu0 0
    %1018 = vmatpush.bf16.msra.mxu0 0
    %1019 = vmatpush.bf16.msra.mxu0 0
    %1020 = vmatpush.bf16.msra.mxu0 %v455
    %1021 = vmatpush.bf16.msra.mxu0 %v414
    %1022 = vmatmul.bf16.gmra.mxu0 %v544
    %v1023 = vpop.f32.mrf.mxu0
    %v1024 = vadd.f32 0.0, %v1023
    %v1025 = vpop.f32.mrf.mxu0
    %1026 = vdwg.mxu0
    %1027 = vmatpush.bf16.msra.mxu0 0
    %1028 = vmatpush.bf16.msra.mxu0 0
    %1029 = vmatpush.bf16.msra.mxu0 0
    %1030 = vmatpush.bf16.msra.mxu0 0
    %1031 = vmatpush.bf16.msra.mxu0 0
    %1032 = vmatpush.bf16.msra.mxu0 0
    %1033 = vmatpush.bf16.msra.mxu0 %v456
    %1034 = vmatpush.bf16.msra.mxu0 %v415
    %1035 = vmatmul.bf16.gmra.mxu0 %v544
    %v1036 = vpop.f32.mrf.mxu0
    %v1037 = vadd.f32 0.0, %v1036
    %v1038 = vpop.f32.mrf.mxu0
    %1039 = vdwg.mxu0
    %1040 = vmatpush.bf16.msra.mxu0 0
    %1041 = vmatpush.bf16.msra.mxu0 0
    %1042 = vmatpush.bf16.msra.mxu0 0
    %1043 = vmatpush.bf16.msra.mxu0 0
    %1044 = vmatpush.bf16.msra.mxu0 0
    %1045 = vmatpush.bf16.msra.mxu0 0
    %1046 = vmatpush.bf16.msra.mxu0 %v457
    %1047 = vmatpush.bf16.msra.mxu0 %v416
    %1048 = vmatmul.bf16.gmra.mxu0 %v544
    %v1049 = vpop.f32.mrf.mxu0
    %v1050 = vadd.f32 0.0, %v1049
    %v1051 = vpop.f32.mrf.mxu0
    %1052 = vdwg.mxu0
    %1053 = vmatpush.bf16.msra.mxu0 0
    %1054 = vmatpush.bf16.msra.mxu0 0
    %1055 = vmatpush.bf16.msra.mxu0 0
    %1056 = vmatpush.bf16.msra.mxu0 0
    %1057 = vmatpush.bf16.msra.mxu0 0
    %1058 = vmatpush.bf16.msra.mxu0 0
    %1059 = vmatpush.bf16.msra.mxu0 %v458
    %1060 = vmatpush.bf16.msra.mxu0 %v417
    %1061 = vmatmul.bf16.gmra.mxu0 %v544
    %v1062 = vpop.f32.mrf.mxu0
    %v1063 = vadd.f32 0.0, %v1062
    %v1064 = vpop.f32.mrf.mxu0
    %1065 = vdwg.mxu0
    %1066 = vmatpush.bf16.msra.mxu0 0
    %1067 = vmatpush.bf16.msra.mxu0 0
    %1068 = vmatpush.bf16.msra.mxu0 0
    %1069 = vmatpush.bf16.msra.mxu0 0
    %1070 = vmatpush.bf16.msra.mxu0 0
    %1071 = vmatpush.bf16.msra.mxu0 0
    %1072 = vmatpush.bf16.msra.mxu0 %v459
    %1073 = vmatpush.bf16.msra.mxu0 %v418
    %1074 = vmatmul.bf16.gmra.mxu0 %v544
    %v1075 = vpop.f32.mrf.mxu0
    %v1076 = vadd.f32 0.0, %v1075
    %v1077 = vpop.f32.mrf.mxu0
    %1078 = vdwg.mxu0
    %v1079 = vld [vmem:[#allocation4] sm:$0xff]
    %v1080 = vld [vmem:[#allocation4 + $0x8] sm:$0xff]
    %v1081 = vld [vmem:[#allocation4 + $0x10] sm:$0xff]
    %v1082 = vld [vmem:[#allocation4 + $0x18] sm:$0xff]
    %v1083 = vld [vmem:[#allocation4 + $0x20] sm:$0xff]
    %v1084 = vld [vmem:[#allocation4 + $0x28] sm:$0x1]
    %v1091 = vperm.slane %v1079, 0
    %v1092 = vperm.slane %v1079, 1
    %v1093 = vperm.slane %v1079, 2
    %v1094 = vperm.slane %v1079, 3
    %v1095 = vperm.slane %v1079, 4
    %v1096 = vperm.slane %v1079, 5
    %v1097 = vperm.slane %v1079, 6
    %v1098 = vperm.slane %v1079, 7
    %v1099 = vperm.slane %v1080, 0
    %v1100 = vperm.slane %v1080, 1
    %v1101 = vperm.slane %v1080, 2
    %v1102 = vperm.slane %v1080, 3
    %v1103 = vperm.slane %v1080, 4
    %v1104 = vperm.slane %v1080, 5
    %v1105 = vperm.slane %v1080, 6
    %v1106 = vperm.slane %v1080, 7
    %v1107 = vperm.slane %v1081, 0
    %v1108 = vperm.slane %v1081, 1
    %v1109 = vperm.slane %v1081, 2
    %v1110 = vperm.slane %v1081, 3
    %v1111 = vperm.slane %v1081, 4
    %v1112 = vperm.slane %v1081, 5
    %v1113 = vperm.slane %v1081, 6
    %v1114 = vperm.slane %v1081, 7
    %v1115 = vperm.slane %v1082, 0
    %v1116 = vperm.slane %v1082, 1
    %v1117 = vperm.slane %v1082, 2
    %v1118 = vperm.slane %v1082, 3
    %v1119 = vperm.slane %v1082, 4
    %v1120 = vperm.slane %v1082, 5
    %v1121 = vperm.slane %v1082, 6
    %v1122 = vperm.slane %v1082, 7
    %v1123 = vperm.slane %v1083, 0
    %v1124 = vperm.slane %v1083, 1
    %v1125 = vperm.slane %v1083, 2
    %v1126 = vperm.slane %v1083, 3
    %v1127 = vperm.slane %v1083, 4
    %v1128 = vperm.slane %v1083, 5
    %v1129 = vperm.slane %v1083, 6
    %v1130 = vperm.slane %v1083, 7
    %v1131 = vperm.slane %v1084, 0
    %v1173 = vmul.f32 %v556, %v1091
    %v1174 = vmul.f32 %v569, %v1092
    %v1175 = vmul.f32 %v582, %v1093
    %v1176 = vmul.f32 %v595, %v1094
    %v1177 = vmul.f32 %v608, %v1095
    %v1178 = vmul.f32 %v621, %v1096
    %v1179 = vmul.f32 %v634, %v1097
    %v1180 = vmul.f32 %v647, %v1098
    %v1181 = vmul.f32 %v660, %v1099
    %v1182 = vmul.f32 %v673, %v1100
    %v1183 = vmul.f32 %v686, %v1101
    %v1184 = vmul.f32 %v699, %v1102
    %v1185 = vmul.f32 %v712, %v1103
    %v1186 = vmul.f32 %v725, %v1104
    %v1187 = vmul.f32 %v738, %v1105
    %v1188 = vmul.f32 %v751, %v1106
    %v1189 = vmul.f32 %v764, %v1107
    %v1190 = vmul.f32 %v777, %v1108
    %v1191 = vmul.f32 %v790, %v1109
    %v1192 = vmul.f32 %v803, %v1110
    %v1193 = vmul.f32 %v816, %v1111
    %v1194 = vmul.f32 %v829, %v1112
    %v1195 = vmul.f32 %v842, %v1113
    %v1196 = vmul.f32 %v855, %v1114
    %v1197 = vmul.f32 %v868, %v1115
    %v1198 = vmul.f32 %v881, %v1116
    %v1199 = vmul.f32 %v894, %v1117
    %v1200 = vmul.f32 %v907, %v1118
    %v1201 = vmul.f32 %v920, %v1119
    %v1202 = vmul.f32 %v933, %v1120
    %v1203 = vmul.f32 %v946, %v1121
    %v1204 = vmul.f32 %v959, %v1122
    %v1205 = vmul.f32 %v972, %v1123
    %v1206 = vmul.f32 %v985, %v1124
    %v1207 = vmul.f32 %v998, %v1125
    %v1208 = vmul.f32 %v1011, %v1126
    %v1209 = vmul.f32 %v1024, %v1127
    %v1210 = vmul.f32 %v1037, %v1128
    %v1211 = vmul.f32 %v1050, %v1129
    %v1212 = vmul.f32 %v1063, %v1130
    %v1213 = vmul.f32 %v1076, %v1131
    %v1254 = vrot.slane %v1174, 6
    %v1255 = vrot.slane %v1175, 4
    %v1256 = vrot.slane %v1176, 2
    %v1257 = vrot.slane %v1178, 6
    %v1258 = vrot.slane %v1179, 4
    %v1259 = vrot.slane %v1180, 2
    %v1260 = vrot.slane %v1182, 6
    %v1261 = vrot.slane %v1183, 4
    %v1262 = vrot.slane %v1184, 2
    %v1263 = vrot.slane %v1186, 6
    %v1264 = vrot.slane %v1187, 4
    %v1265 = vrot.slane %v1188, 2
    %v1266 = vrot.slane %v1190, 6
    %v1267 = vrot.slane %v1191, 4
    %v1268 = vrot.slane %v1192, 2
    %v1269 = vrot.slane %v1194, 6
    %v1270 = vrot.slane %v1195, 4
    %v1271 = vrot.slane %v1196, 2
    %v1272 = vrot.slane %v1198, 6
    %v1273 = vrot.slane %v1199, 4
    %v1274 = vrot.slane %v1200, 2
    %v1275 = vrot.slane %v1202, 6
    %v1276 = vrot.slane %v1203, 4
    %v1277 = vrot.slane %v1204, 2
    %v1278 = vrot.slane %v1206, 6
    %v1279 = vrot.slane %v1207, 4
    %v1280 = vrot.slane %v1208, 2
    %v1281 = vrot.slane %v1210, 6
    %v1282 = vrot.slane %v1211, 4
    %v1283 = vrot.slane %v1212, 2
    %vm1284 = vcmask 1041408
    %v1285 = vsel %vm1284, %v1173, %v1254
    %vm1286 = vcmask 1045508
    %v1287 = vsel %vm1286, %v1255, %v1256
    %vm1288 = vcmask 1043456
    %v1289 = vsel %vm1288, %v1285, %v1287
    %v1290 = vsel %vm1284, %v1177, %v1257
    %v1291 = vsel %vm1286, %v1258, %v1259
    %v1292 = vsel %vm1288, %v1290, %v1291
    %v1293 = vsel %vm1284, %v1181, %v1260
    %v1294 = vsel %vm1286, %v1261, %v1262
    %v1295 = vsel %vm1288, %v1293, %v1294
    %v1296 = vsel %vm1284, %v1185, %v1263
    %v1297 = vsel %vm1286, %v1264, %v1265
    %v1298 = vsel %vm1288, %v1296, %v1297
    %v1299 = vsel %vm1284, %v1189, %v1266
    %v1300 = vsel %vm1286, %v1267, %v1268
    %v1301 = vsel %vm1288, %v1299, %v1300
    %v1302 = vsel %vm1284, %v1193, %v1269
    %v1303 = vsel %vm1286, %v1270, %v1271
    %v1304 = vsel %vm1288, %v1302, %v1303
    %v1305 = vsel %vm1284, %v1197, %v1272
    %v1306 = vsel %vm1286, %v1273, %v1274
    %v1307 = vsel %vm1288, %v1305, %v1306
    %v1308 = vsel %vm1284, %v1201, %v1275
    %v1309 = vsel %vm1286, %v1276, %v1277
    %v1310 = vsel %vm1288, %v1308, %v1309
    %v1311 = vsel %vm1284, %v1205, %v1278
    %v1312 = vsel %vm1286, %v1279, %v1280
    %v1313 = vsel %vm1288, %v1311, %v1312
    %v1314 = vsel %vm1284, %v1209, %v1281
    %v1315 = vsel %vm1286, %v1282, %v1283
    %v1316 = vsel %vm1288, %v1314, %v1315
    %1327 = vst [vmem:[%s3] sm:$0xff] %v1289
    %1328 = vst [vmem:[%s3 + $0x8] sm:$0xff] %v1292
    %1329 = vst [vmem:[%s3 + $0x10] sm:$0xff] %v1295
    %1330 = vst [vmem:[%s3 + $0x18] sm:$0xff] %v1298
    %1331 = vst [vmem:[%s3 + $0x20] sm:$0xff] %v1301
    %1332 = vst [vmem:[%s3 + $0x28] sm:$0xff] %v1304
    %1333 = vst [vmem:[%s3 + $0x30] sm:$0xff] %v1307
    %1334 = vst [vmem:[%s3 + $0x38] sm:$0xff] %v1310
    %1335 = vst [vmem:[%s3 + $0x40] sm:$0xff] %v1313
    %1336 = vst [vmem:[%s3 + $0x48] sm:$0xff] %v1316
    %1337 = vst [vmem:[%s3 + $0x50] sm:$0x3] %v1213
    // Predicated region
    $region22: #{structure_decoder_forward.1} parent=1 // pred_check
      _
    $region23: #{structure_decoder_forward.1} parent=1 // pred_check_branch
      %1339 = sbr.rel (0) target = $region25
    $region24: #{structure_decoder_forward.1} parent=1 // pred_region
      _
    $region25: #{structure_decoder_forward.1} parent=1 // pred_fallthru
      _
    // Predicated region
    $region26: #{structure_decoder_forward.1} parent=1 // pred_check
      _
    $region27: #{structure_decoder_forward.1} parent=1 // pred_check_branch
      %1341 = sbr.rel (0) target = $region29
    $region28: #{structure_decoder_forward.1} parent=1 // pred_region
      _
    $region29: #{structure_decoder_forward.1} parent=1 // pred_fallthru
      _
    %1342 = vsyncpa [#allocation3], 1
    %1343 = vsyncpa [#allocation5], 1

</llo_original>
